<compile_context>
chip_gen: v6e
topology: v6e:2x2x1
jax: 0.10.0
libtpu: 0.0.40
codegen_flags: <defaults>
</compile_context>

<pallas_src>
import jax
import jax.numpy as jnp
from jax import lax
from jax.experimental import pallas as pl
from jax.experimental.pallas import tpu as pltpu


# ----------------------------------------------------------------------------
# Fused kernel: (backbone linear, K-tiled) + bias + L2 normalize(dim=-1)
# ----------------------------------------------------------------------------
def _backbone_normalize_kernel(x_ref, w_ref, b_ref, o_ref, acc_ref):
    k = pl.program_id(0)

    # --- init accumulator on first K step ---
    @pl.when(k == 0)
    def _():
        acc_ref[...] = jnp.zeros_like(acc_ref)

    # --- bf16 MXU matmul, f32 accumulation in VMEM scratch ---
    acc_ref[...] += jnp.dot(
        x_ref[...], w_ref[...], preferred_element_type=jnp.float32
    )

    # --- finalize: bias add + L2 normalize + single lane-dense output store ---
    @pl.when(k == pl.num_programs(0) - 1)
    def _():
        y = acc_ref[...] + b_ref[...]                       # f32 bias add (loop-invariant)
        ss = jnp.sum(y * y, axis=-1, keepdims=True)         # f32 row-wise sum of squares
        # F.normalize: x / max(||x||, eps), eps = 1e-12.  rsqrt runs on the EUP.
        inv = jnp.minimum(lax.rsqrt(ss), jnp.float32(1e12))
        o_ref[...] = (y * inv).astype(o_ref.dtype)


# ----------------------------------------------------------------------------
# Wrapper
# ----------------------------------------------------------------------------
def normalize_forward(x, params, *, tk=256):
    """Normalize.forward: backbone stand-in + F.normalize(dim=-1, p=2).detach()."""
    B = x.shape[0]
    feats = x.reshape(B, -1)                                # backbone stem: flatten NCHW
    P = feats.shape[1]
    D = params["w"].shape[1]
    assert D % 128 == 0, "feature dim must be lane-dense (multiple of 128)"

    # Zero-pad the contraction dim to a multiple of tk (zeros contribute nothing).
    P_pad = pl.cdiv(P, tk) * tk
    w = params["w"]
    if P_pad != P:
        feats = jnp.pad(feats, ((0, 0), (0, P_pad - P)))
        w = jnp.pad(w, ((0, P_pad - P), (0, 0)))

    # bf16 operands for the MXU; bias / accumulation / normalize stay f32.
    feats_bf = feats.astype(jnp.bfloat16)
    w_bf = w.astype(jnp.bfloat16)
    b = params["b"].reshape(1, D).astype(jnp.float32)

    nk = P_pad // tk
    out = pl.pallas_call(
        _backbone_normalize_kernel,
        out_shape=jax.ShapeDtypeStruct((B, D), jnp.float32),
        grid=(nk,),
        in_specs=[
            pl.BlockSpec((B, tk), lambda k: (0, k)),        # activations: K-tiled
            pl.BlockSpec((tk, D), lambda k: (k, 0)),        # weights:     K-tiled
            pl.BlockSpec((1, D), lambda k: (0, 0)),         # bias: loop-invariant
        ],
        out_specs=pl.BlockSpec((B, D), lambda k: (0, 0)),   # resident across reduction
        scratch_shapes=[pltpu.VMEM((B, D), jnp.float32)],   # f32 accumulator
        compiler_params=pltpu.CompilerParams(
            dimension_semantics=("arbitrary",),             # reduction axis
        ),
    )(feats_bf, w_bf, b)

    # .detach() -> stop_gradient (forward values unchanged)
    return lax.stop_gradient(out)


def normalize_reference(x, params):
    """Pure-JAX reference with the same bf16 matmul precision."""
    B = x.shape[0]
    feats = x.reshape(B, -1).astype(jnp.bfloat16).astype(jnp.float32)
    w = params["w"].astype(jnp.bfloat16).astype(jnp.float32)
    y = feats @ w + params["b"].reshape(1, -1).astype(jnp.float32)
    n = jnp.maximum(jnp.sqrt(jnp.sum(y * y, axis=-1, keepdims=True)), 1e-12)
    return y / n


# ----------------------------------------------------------------------------
if __name__ == "__main__":
    # Small shapes consistent with the module: NCHW image input into a backbone
    # producing (B, D) features, then L2-normalized over D.
    B, C, H, W = 2, 4, 16, 16
    D = 256                                    # lane-dense feature dim
    P = C * H * W                              # 1024 flattened backbone input dim

    key = jax.random.PRNGKey(0)
    kx, kw, kb = jax.random.split(key, 3)

    x = jax.random.normal(kx, (B, C, H, W), dtype=jnp.float32)
    params = {
        "w": jax.random.normal(kw, (P, D), dtype=jnp.float32) * 0.05,
        "b": jax.random.normal(kb, (1, D), dtype=jnp.float32) * 0.05,
    }

    fwd = jax.jit(normalize_forward)           # fold flatten/pad/cast into the same jit
    out = fwd(x, params)
    out = jax.block_until_ready(out)

    ref = normalize_reference(x, params)
    assert out.shape == (B, D), out.shape
    assert jnp.allclose(out, ref, atol=1e-4, rtol=1e-4), "mismatch vs reference"
    # rows must be unit-norm after F.normalize
    row_norms = jnp.sqrt(jnp.sum(out * out, axis=-1))
    assert jnp.allclose(row_norms, 1.0, atol=1e-3), "output rows not L2-normalized"

    print("KERNEL_OK")
</pallas_src>

<mosaic_0001>
module attributes {stable_mosaic.version = 11 : i64} {
  func.func @_backbone_normalize_kernel(%arg0: i32, %arg1: memref<2x256xbf16, #tpu.memory_space<vmem>>, %arg2: memref<256x256xbf16, #tpu.memory_space<vmem>>, %arg3: memref<1x256xf32, #tpu.memory_space<vmem>>, %arg4: memref<2x256xf32, #tpu.memory_space<vmem>>, %arg5: memref<2x256xf32, #tpu.memory_space<vmem>>) attributes {dimension_semantics = [#tpu.dimension_semantics<arbitrary>], iteration_bounds = array<i64: 4>, scalar_prefetch = 0 : i64, scratch_operands = 1 : i64, tpu.core_type = #tpu.core_type<tc>, window_params = [{transform_indices = @transform_0, window_bounds = array<i64: 2, 256>}, {transform_indices = @transform_1, window_bounds = array<i64: 256, 256>}, {pipeline_mode = #tpu.pipeline_mode<synchronous>, transform_indices = @transform_2, window_bounds = array<i64: 1, 256>}, {pipeline_mode = #tpu.pipeline_mode<synchronous>, transform_indices = @transform_3, window_bounds = array<i64: 2, 256>}]} {
    %c0_i32 = arith.constant 0 : i32
    %0 = arith.cmpi eq, %arg0, %c0_i32 : i32
    %1 = arith.extui %0 : i1 to i32
    %c0_i32_0 = arith.constant 0 : i32
    %2 = arith.cmpi ne, %1, %c0_i32_0 : i32
    scf.if %2 {
      %cst_9 = arith.constant 0.000000e+00 : f32
      %12 = vector.broadcast %cst_9 : f32 to vector<2x256xf32>
      %c0_10 = arith.constant 0 : index
      %c0_11 = arith.constant 0 : index
      %13 = vector.load %arg5[%c0_10, %c0_11] : memref<2x256xf32, #tpu.memory_space<vmem>>, vector<2x256xf32>
      tpu.vector_store %arg5[%c0_10, %c0_11], %12 {strides = array<i32>} : memref<2x256xf32, #tpu.memory_space<vmem>>, vector<2x256xf32>,
    } else {
    }
    %c0 = arith.constant 0 : index
    %c0_1 = arith.constant 0 : index
    %3 = vector.load %arg5[%c0, %c0_1] : memref<2x256xf32, #tpu.memory_space<vmem>>, vector<2x256xf32>
    %c0_2 = arith.constant 0 : index
    %c0_3 = arith.constant 0 : index
    %4 = vector.load %arg1[%c0_2, %c0_3] : memref<2x256xbf16, #tpu.memory_space<vmem>>, vector<2x256xbf16>
    %c0_4 = arith.constant 0 : index
    %c0_5 = arith.constant 0 : index
    %5 = vector.load %arg2[%c0_4, %c0_5] : memref<256x256xbf16, #tpu.memory_space<vmem>>, vector<256x256xbf16>
    %cst = arith.constant dense<0.000000e+00> : vector<2x256xf32>
    %6 = tpu.matmul %4, %5, %cst {dimension_numbers = #tpu.dot_dimension_numbers<[1], [0], [0], [1], [0, 0, 1, 1], [], []>} : vector<2x256xbf16>, vector<256x256xbf16>, vector<2x256xf32> -> vector<2x256xf32>
    %7 = arith.addf %3, %6 : vector<2x256xf32>
    %c0_6 = arith.constant 0 : index
    %c0_7 = arith.constant 0 : index
    %8 = vector.load %arg5[%c0_6, %c0_7] : memref<2x256xf32, #tpu.memory_space<vmem>>, vector<2x256xf32>
    tpu.vector_store %arg5[%c0_6, %c0_7], %7 {strides = array<i32>} : memref<2x256xf32, #tpu.memory_space<vmem>>, vector<2x256xf32>,
    %c3_i32 = arith.constant 3 : i32
    %9 = arith.cmpi eq, %arg0, %c3_i32 : i32
    %10 = arith.extui %9 : i1 to i32
    %c0_i32_8 = arith.constant 0 : i32
    %11 = arith.cmpi ne, %10, %c0_i32_8 : i32
    scf.if %11 {
      %c0_9 = arith.constant 0 : index
      %c0_10 = arith.constant 0 : index
      %12 = vector.load %arg5[%c0_9, %c0_10] : memref<2x256xf32, #tpu.memory_space<vmem>>, vector<2x256xf32>
      %c0_11 = arith.constant 0 : index
      %c0_12 = arith.constant 0 : index
      %13 = vector.load %arg3[%c0_11, %c0_12] : memref<1x256xf32, #tpu.memory_space<vmem>>, vector<1x256xf32>
      %14 = vector.broadcast %13 : vector<1x256xf32> to vector<2x256xf32>
      %15 = arith.addf %12, %14 : vector<2x256xf32>
      %16 = arith.mulf %15, %15 : vector<2x256xf32>
      %cst_13 = arith.constant dense<0.000000e+00> : vector<2xf32>
      %17 = vector.multi_reduction <add>, %16, %cst_13 [1] : vector<2x256xf32> to vector<2xf32>
      %18 = vector.shape_cast %17 : vector<2xf32> to vector<2x1xf32>
      %19 = math.rsqrt %18 : vector<2x1xf32>
      %cst_14 = arith.constant 9.99999995E+11 : f32
      %20 = vector.broadcast %cst_14 : f32 to vector<2x1xf32>
      %21 = arith.minimumf %19, %20 : vector<2x1xf32>
      %22 = vector.broadcast %21 : vector<2x1xf32> to vector<2x256xf32>
      %23 = arith.mulf %15, %22 : vector<2x256xf32>
      %c0_15 = arith.constant 0 : index
      %c0_16 = arith.constant 0 : index
      %24 = vector.load %arg4[%c0_15, %c0_16] : memref<2x256xf32, #tpu.memory_space<vmem>>, vector<2x256xf32>
      tpu.vector_store %arg4[%c0_15, %c0_16], %23 {strides = array<i32>} : memref<2x256xf32, #tpu.memory_space<vmem>>, vector<2x256xf32>,
    } else {
    }
    return
  }
  func.func @transform_0(%arg0: i32) -> (i32, i32) {
    %c0_i32 = arith.constant 0 : i32
    %c0_i32_0 = arith.constant 0 : i32
    return %c0_i32, %arg0 : i32, i32
  }
  func.func @transform_1(%arg0: i32) -> (i32, i32) {
    %c0_i32 = arith.constant 0 : i32
    %c0_i32_0 = arith.constant 0 : i32
    return %arg0, %c0_i32 : i32, i32
  }
  func.func @transform_2(%arg0: i32) -> (i32, i32) {
    %c0_i32 = arith.constant 0 : i32
    %c0_i32_0 = arith.constant 0 : i32
    %c0_i32_1 = arith.constant 0 : i32
    return %c0_i32, %c0_i32_0 : i32, i32
  }
  func.func @transform_3(%arg0: i32) -> (i32, i32) {
    %c0_i32 = arith.constant 0 : i32
    %c0_i32_0 = arith.constant 0 : i32
    %c0_i32_1 = arith.constant 0 : i32
    return %c0_i32, %c0_i32_0 : i32, i32
  }
}

</mosaic_0001>

<llo_original>
// kernel: normalize_forward.1
$region0: #{normalize_forward.1}
  #allocation0 [shape = 'u32[]', space=smem, size = 0x4, offset = 0x4, fixed_abs, tag = 'smem constant byte address 0x4 - core index']
  #allocation1 [shape = 'u32[144,128]{1,0:T(1,128)}', space=vmem, size = 0x12000, scoped, tag = 'internal scratch']
  #allocation2 [shape = 'f32[2,256]{1,0:T(2,128)}', space=vmem, size = 0x800, scoped, tag = 'scratch operand']
  %s0 = inlined_call_operand.vmem [shape: bf16[2,1024], index: 0, kind: input, shape index: {}]
  %s1 = inlined_call_operand.vmem [shape: bf16[1024,256], index: 1, kind: input, shape index: {}]
  %s2 = inlined_call_operand.vmem [shape: f32[1,256], index: 2, kind: input, shape index: {}]
  %s3 = inlined_call_operand.hbm [shape: f32[2,256], index: 3, kind: output, shape index: {}]
  %s4 = sld [smem:[#allocation0]]
  $region53: #{normalize_forward.1} parent=0
    _
  %s6 = ssub.s32 1, %s4
  %s7 = scalar_select 0, %s6, %s4
  $region1: #{normalize_forward.1} parent=0
    #allocation3 [shape = 'u8[2048]{0}', space=vmem, size = 0x800, scoped, tag = 'output window, operand 0, single buffered']
    #allocation4 [shape = 's32[2]{0}', space=sflag, size = 0x8, scoped, tag = 'scoped memory for normalize_forward.1']
    %8 = vsyncpa [#allocation4], 0
    loop: start=0, step=1, limit=6
    $region2: #{normalize_forward.1} parent=1 // loop_pre_header
      _
    $region3: #{normalize_forward.1} parent=1 // loop_header
      %s10 = sphi 0, %s14
      %p11 = scmp.ge.s32.totalorder %s10, 6
      %s20 = sphi 0, %s22
      %s23 = sphi 0, %s20
      %s24 = sphi 0, %s23
      %s40 = sphi 0, %s24
      %s46 = sphi 0, %s48
      %s49 = sphi 0, %s46
      %s50 = sphi 0, %s49
      %s66 = sphi 0, %s50
      %s70 = sphi 0, %s70
      %s72 = sphi 0, %s70
      %s73 = sphi 0, %s72
      %s87 = sphi 0, %s73
      %s91 = sphi 0, %s91
      %s93 = sphi 0, %s91
      %s94 = sphi 0, %s93
      %s108 = sphi 0, %s94
    $region4: #{normalize_forward.1} parent=1 // loop_header_branch
      %13 = sbr.rel (%p11) target = $region8
    $region5: #{normalize_forward.1} parent=1 // loop_body
      %s15 = ssub.s32 %s10, 1
      %s16 = ssub.s32 %s10, 2
      %s17 = sadd.s32 %s10, 1
      %s18 = ssub.s32 %s10, %s17
      %p19 = scmp.eq.s32.totalorder %s18, 0
      %s21 = sadd.s32 %s20, 1
      %s22 = scalar_select %p19, %s20, %s21
      %p25 = pneg %p19
      %p26 = scmp.eq.s32.totalorder %s10, 3
      %p27 = por %p25, %p26
      %p28 = scmp.ne.s32.totalorder %s20, %s23
      %p29 = scmp.eq.s32.totalorder %s10, 0
      %p30 = por %p28, %p29
      %p31 = scmp.ne.s32.totalorder %s20, %s23
      %p32 = scmp.eq.s32.totalorder %s15, 3
      %p33 = por %p31, %p32
      %p34 = scmp.ne.s32.totalorder %s23, %s24
      %p35 = scmp.eq.s32.totalorder %s15, 0
      %p36 = por %p34, %p35
      %p37 = scmp.ne.s32.totalorder %s23, %s24
      %p38 = scmp.eq.s32.totalorder %s16, 3
      %p39 = por %p37, %p38
      %p41 = scmp.ne.s32.totalorder %s24, %s40
      %p42 = scmp.eq.s32.totalorder %s16, 0
      %p43 = por %p41, %p42
      %s44 = ssub.s32 %s10, %s17
      %p45 = scmp.eq.s32.totalorder %s44, 0
      %s47 = sadd.s32 %s46, 1
      %s48 = scalar_select %p45, %s46, %s47
      %p51 = pneg %p45
      %p52 = scmp.eq.s32.totalorder %s10, 3
      %p53 = por %p51, %p52
      %p54 = scmp.ne.s32.totalorder %s46, %s49
      %p55 = scmp.eq.s32.totalorder %s10, 0
      %p56 = por %p54, %p55
      %p57 = scmp.ne.s32.totalorder %s46, %s49
      %p58 = scmp.eq.s32.totalorder %s15, 3
      %p59 = por %p57, %p58
      %p60 = scmp.ne.s32.totalorder %s49, %s50
      %p61 = scmp.eq.s32.totalorder %s15, 0
      %p62 = por %p60, %p61
      %p63 = scmp.ne.s32.totalorder %s49, %s50
      %p64 = scmp.eq.s32.totalorder %s16, 3
      %p65 = por %p63, %p64
      %p67 = scmp.ne.s32.totalorder %s50, %s66
      %p68 = scmp.eq.s32.totalorder %s16, 0
      %p69 = por %p67, %p68
      %s71 = sadd.s32 %s70, 1
      %p74 = scmp.eq.s32.totalorder %s10, 3
      %p75 = scmp.ne.s32.totalorder %s70, %s72
      %p76 = scmp.eq.s32.totalorder %s10, 0
      %p77 = por %p75, %p76
      %p78 = scmp.ne.s32.totalorder %s70, %s72
      %p79 = scmp.eq.s32.totalorder %s15, 3
      %p80 = por %p78, %p79
      %p81 = scmp.ne.s32.totalorder %s72, %s73
      %p82 = scmp.eq.s32.totalorder %s15, 0
      %p83 = por %p81, %p82
      %p84 = scmp.ne.s32.totalorder %s72, %s73
      %p85 = scmp.eq.s32.totalorder %s16, 3
      %p86 = por %p84, %p85
      %p88 = scmp.ne.s32.totalorder %s73, %s87
      %p89 = scmp.eq.s32.totalorder %s16, 0
      %p90 = por %p88, %p89
      %s92 = sadd.s32 %s91, 1
      %p95 = scmp.eq.s32.totalorder %s10, 3
      %p96 = scmp.ne.s32.totalorder %s91, %s93
      %p97 = scmp.eq.s32.totalorder %s10, 0
      %p98 = por %p96, %p97
      %p99 = scmp.ne.s32.totalorder %s91, %s93
      %p100 = scmp.eq.s32.totalorder %s15, 3
      %p101 = por %p99, %p100
      %p102 = scmp.ne.s32.totalorder %s93, %s94
      %p103 = scmp.eq.s32.totalorder %s15, 0
      %p104 = por %p102, %p103
      %p105 = scmp.ne.s32.totalorder %s93, %s94
      %p106 = scmp.eq.s32.totalorder %s16, 3
      %p107 = por %p105, %p106
      %p109 = scmp.ne.s32.totalorder %s94, %s108
      %p110 = scmp.eq.s32.totalorder %s16, 0
      %p111 = por %p109, %p110
      %p112 = scmp.le.s32.totalorder 1, %s10
      %p113 = scmp.lt.s32.totalorder %s10, 5
      %p114 = pnand %p112, %p113
      %p115 = pneg %p114
      // Predicated region
      $region9: #{normalize_forward.1} parent=5 // pred_check
        _
      $region10: #{normalize_forward.1} parent=5 // pred_check_branch
        %117 = sbr.rel (%p114) target = $region12
      $region11: #{normalize_forward.1} parent=5 // pred_region
        %s118 = ssub.s32 %s10, 1
        // Predicated region
        $region13: #{normalize_forward.1} parent=11 // pred_check
          %p119 = pneg %p83
        $region14: #{normalize_forward.1} parent=11 // pred_check_branch
          %121 = sbr.rel (%p119) target = $region16
        $region15: #{normalize_forward.1} parent=11 // pred_region
          _
        $region16: #{normalize_forward.1} parent=11 // pred_fallthru
          _
      $region12: #{normalize_forward.1} parent=5 // pred_fallthru
        _
      %p122 = scmp.lt.s32.totalorder %s10, 4
      // Predicated region
      $region17: #{normalize_forward.1} parent=5 // pred_check
        %p123 = pneg %p122
      $region18: #{normalize_forward.1} parent=5 // pred_check_branch
        %125 = sbr.rel (%p123) target = $region20
      $region19: #{normalize_forward.1} parent=5 // pred_region
        // Predicated region
        $region21: #{normalize_forward.1} parent=19 // pred_check
          %p126 = pneg %p30
        $region22: #{normalize_forward.1} parent=19 // pred_check_branch
          %128 = sbr.rel (%p126) target = $region24
        $region23: #{normalize_forward.1} parent=19 // pred_region
          %s129 = smul.u32 2, %s10
          %p130 = scmp.lt.s32.totalorder %s129, 7
          %s131 = scalar_select %p130, %s129, 7
          %s132 = scalar_lea.vmem %s0, %s131
          %s133 = smul.u32 2, %s10
        $region24: #{normalize_forward.1} parent=19 // pred_fallthru
          _
        // Predicated region
        $region25: #{normalize_forward.1} parent=19 // pred_check
          %p134 = pneg %p56
        $region26: #{normalize_forward.1} parent=19 // pred_check_branch
          %136 = sbr.rel (%p134) target = $region28
        $region27: #{normalize_forward.1} parent=19 // pred_region
          %s137 = smul.u32 32, %s10
          %p138 = scmp.lt.s32.totalorder %s137, 127
          %s139 = scalar_select %p138, %s137, 127
          %s140 = smul.addr %s139, 2
          %s141 = smul.addr %s140, 4
          %s142 = scalar_lea.vmem %s1, %s141
          %s143 = smul.u32 32, %s10
        $region28: #{normalize_forward.1} parent=19 // pred_fallthru
          _
      $region20: #{normalize_forward.1} parent=5 // pred_fallthru
        _
      %p144 = scmp.le.s32.totalorder 1, %s10
      %p145 = scmp.lt.s32.totalorder %s10, 5
      %p146 = pnand %p144, %p145
      %p147 = pneg %p146
      // Predicated region
      $region29: #{normalize_forward.1} parent=5 // pred_check
        _
      $region30: #{normalize_forward.1} parent=5 // pred_check_branch
        %149 = sbr.rel (%p146) target = $region32
      $region31: #{normalize_forward.1} parent=5 // pred_region
        %s150 = ssub.s32 %s10, 1
        %s151 = smul.u32 2, %s15
        %p152 = scmp.lt.s32.totalorder %s151, 7
        %s153 = scalar_select %p152, %s151, 7
        %s154 = scalar_lea.vmem %s0, %s153
        %p155 = pneg %p36
        %p156 = pneg %p33
        %s157 = smul.u32 32, %s15
        %p158 = scmp.lt.s32.totalorder %s157, 127
        %s159 = scalar_select %p158, %s157, 127
        %s160 = smul.addr %s159, 2
        %s161 = smul.addr %s160, 4
        %s162 = scalar_lea.vmem %s1, %s161
        %p163 = pneg %p62
        %p164 = pneg %p59
        %p165 = pneg %p83
        %p166 = pneg %p80
        %p167 = pneg %p104
        %p168 = pneg %p101
        %s169 = smul.u32 2, %s15
        %p170 = scmp.lt.s32.totalorder %s169, 7
        %s171 = scalar_select %p170, %s169, 7
        %s172 = scalar_lea.vmem %s0, %s171
        %s173 = smul.u32 2, %s15
        %s174 = smul.u32 32, %s15
        %p175 = scmp.lt.s32.totalorder %s174, 127
        %s176 = scalar_select %p175, %s174, 127
        %s177 = smul.addr %s176, 2
        %s178 = smul.addr %s177, 4
        %s179 = scalar_lea.vmem %s1, %s178
        %s180 = smul.u32 32, %s15
        %p181 = scmp.eq.s32.totalorder %s15, 0
        // Predicated region
        $region33: #{normalize_forward.1} parent=31 // pred_check
          %p182 = pneg %p181
        $region34: #{normalize_forward.1} parent=31 // pred_check_branch
          %184 = sbr.rel (%p182) target = $region36
        $region35: #{normalize_forward.1} parent=31 // pred_region
          %185 = vst [vmem:[#allocation2] sm:$0xf] 0.0
        $region36: #{normalize_forward.1} parent=31 // pred_fallthru
          _
        %v186 = vld [vmem:[#allocation2] sm:$0xf]
        %v187 = vld [vmem:[%s172] sm:$0x3]
        %v188 = vld [vmem:[%s179] sm:$0xff]
        %v189 = vld [vmem:[%s179 + $0x8] sm:$0xff]
        %v190 = vld [vmem:[%s179 + $0x10] sm:$0xff]
        %v191 = vld [vmem:[%s179 + $0x18] sm:$0xff]
        %v192 = vld [vmem:[%s179 + $0x20] sm:$0xff]
        %v193 = vld [vmem:[%s179 + $0x28] sm:$0xff]
        %v194 = vld [vmem:[%s179 + $0x30] sm:$0xff]
        %v195 = vld [vmem:[%s179 + $0x38] sm:$0xff]
        %v196 = vld [vmem:[%s179 + $0x40] sm:$0xff]
        %v197 = vld [vmem:[%s179 + $0x48] sm:$0xff]
        %v198 = vld [vmem:[%s179 + $0x50] sm:$0xff]
        %v199 = vld [vmem:[%s179 + $0x58] sm:$0xff]
        %v200 = vld [vmem:[%s179 + $0x60] sm:$0xff]
        %v201 = vld [vmem:[%s179 + $0x68] sm:$0xff]
        %v202 = vld [vmem:[%s179 + $0x70] sm:$0xff]
        %v203 = vld [vmem:[%s179 + $0x78] sm:$0xff]
        %v204 = vld [vmem:[%s179 + $0x80] sm:$0xff]
        %v205 = vld [vmem:[%s179 + $0x88] sm:$0xff]
        %v206 = vld [vmem:[%s179 + $0x90] sm:$0xff]
        %v207 = vld [vmem:[%s179 + $0x98] sm:$0xff]
        %v208 = vld [vmem:[%s179 + $0xa0] sm:$0xff]
        %v209 = vld [vmem:[%s179 + $0xa8] sm:$0xff]
        %v210 = vld [vmem:[%s179 + $0xb0] sm:$0xff]
        %v211 = vld [vmem:[%s179 + $0xb8] sm:$0xff]
        %v212 = vld [vmem:[%s179 + $0xc0] sm:$0xff]
        %v213 = vld [vmem:[%s179 + $0xc8] sm:$0xff]
        %v214 = vld [vmem:[%s179 + $0xd0] sm:$0xff]
        %v215 = vld [vmem:[%s179 + $0xd8] sm:$0xff]
        %v216 = vld [vmem:[%s179 + $0xe0] sm:$0xff]
        %v217 = vld [vmem:[%s179 + $0xe8] sm:$0xff]
        %v218 = vld [vmem:[%s179 + $0xf0] sm:$0xff]
        %v219 = vld [vmem:[%s179 + $0xf8] sm:$0xff]
        %v222 = vunpack.c.l.s4 1966171168
        %v223 = vunpack.c.0.s8 %v222
        %v224 = vlaneseq
        %v225 = vshrl.u32 %v224, 7
        %v226 = vsub.s32 %v223, %v225
        %v227 = vrot.slane %v187, %v226
        %v228 = vcombine.high %v227, %v227
        %v230 = vunpack.c.l.s4 1966171168
        %v231 = vunpack.c.0.s8 %v230
        %v232 = vlaneseq
        %v233 = vshrl.u32 %v232, 7
        %v234 = vsub.s32 %v231, %v233
        %v235 = vrot.slane %v227, %v234
        %v237 = vunpack.c.l.s4 1966171168
        %v238 = vunpack.c.0.s8 %v237
        %v239 = vlaneseq
        %v240 = vshrl.u32 %v239, 7
        %v241 = vsub.s32 %v238, %v240
        %v242 = vrot.slane %v228, %v241
        %v277 = vunpack.c.l.b16 %v188
        %v278 = vunpack.c.h.b16 %v188
        %v279 = vunpack.c.l.b16 %v189
        %v280 = vunpack.c.h.b16 %v189
        %v281 = vunpack.c.l.b16 %v190
        %v282 = vunpack.c.h.b16 %v190
        %v283 = vunpack.c.l.b16 %v191
        %v284 = vunpack.c.h.b16 %v191
        %v285 = vunpack.c.l.b16 %v192
        %v286 = vunpack.c.h.b16 %v192
        %v287 = vunpack.c.l.b16 %v193
        %v288 = vunpack.c.h.b16 %v193
        %v289 = vunpack.c.l.b16 %v194
        %v290 = vunpack.c.h.b16 %v194
        %v291 = vunpack.c.l.b16 %v195
        %v292 = vunpack.c.h.b16 %v195
        %v293 = vunpack.c.l.b16 %v196
        %v294 = vunpack.c.h.b16 %v196
        %v295 = vunpack.c.l.b16 %v197
        %v296 = vunpack.c.h.b16 %v197
        %v297 = vunpack.c.l.b16 %v198
        %v298 = vunpack.c.h.b16 %v198
        %v299 = vunpack.c.l.b16 %v199
        %v300 = vunpack.c.h.b16 %v199
        %v301 = vunpack.c.l.b16 %v200
        %v302 = vunpack.c.h.b16 %v200
        %v303 = vunpack.c.l.b16 %v201
        %v304 = vunpack.c.h.b16 %v201
        %v305 = vunpack.c.l.b16 %v202
        %v306 = vunpack.c.h.b16 %v202
        %v307 = vunpack.c.l.b16 %v203
        %v308 = vunpack.c.h.b16 %v203
        %v309 = vunpack.c.l.b16 %v204
        %v310 = vunpack.c.h.b16 %v204
        %v311 = vunpack.c.l.b16 %v205
        %v312 = vunpack.c.h.b16 %v205
        %v313 = vunpack.c.l.b16 %v206
        %v314 = vunpack.c.h.b16 %v206
        %v315 = vunpack.c.l.b16 %v207
        %v316 = vunpack.c.h.b16 %v207
        %v317 = vunpack.c.l.b16 %v208
        %v318 = vunpack.c.h.b16 %v208
        %v319 = vunpack.c.l.b16 %v209
        %v320 = vunpack.c.h.b16 %v209
        %v321 = vunpack.c.l.b16 %v210
        %v322 = vunpack.c.h.b16 %v210
        %v323 = vunpack.c.l.b16 %v211
        %v324 = vunpack.c.h.b16 %v211
        %v325 = vunpack.c.l.b16 %v212
        %v326 = vunpack.c.h.b16 %v212
        %v327 = vunpack.c.l.b16 %v213
        %v328 = vunpack.c.h.b16 %v213
        %v329 = vunpack.c.l.b16 %v214
        %v330 = vunpack.c.h.b16 %v214
        %v331 = vunpack.c.l.b16 %v215
        %v332 = vunpack.c.h.b16 %v215
        %v333 = vunpack.c.l.b16 %v216
        %v334 = vunpack.c.h.b16 %v216
        %v335 = vunpack.c.l.b16 %v217
        %v336 = vunpack.c.h.b16 %v217
        %v337 = vunpack.c.l.b16 %v218
        %v338 = vunpack.c.h.b16 %v218
        %v339 = vunpack.c.l.b16 %v219
        %v340 = vunpack.c.h.b16 %v219
        %v341 = vpack.c.b16 %v279, %v277
        %v342 = vpack.c.b16 %v280, %v278
        %v343 = vpack.c.b16 %v283, %v281
        %v344 = vpack.c.b16 %v284, %v282
        %v345 = vpack.c.b16 %v287, %v285
        %v346 = vpack.c.b16 %v288, %v286
        %v347 = vpack.c.b16 %v291, %v289
        %v348 = vpack.c.b16 %v292, %v290
        %v349 = vpack.c.b16 %v295, %v293
        %v350 = vpack.c.b16 %v296, %v294
        %v351 = vpack.c.b16 %v299, %v297
        %v352 = vpack.c.b16 %v300, %v298
        %v353 = vpack.c.b16 %v303, %v301
        %v354 = vpack.c.b16 %v304, %v302
        %v355 = vpack.c.b16 %v307, %v305
        %v356 = vpack.c.b16 %v308, %v306
        %v357 = vpack.c.b16 %v311, %v309
        %v358 = vpack.c.b16 %v312, %v310
        %v359 = vpack.c.b16 %v315, %v313
        %v360 = vpack.c.b16 %v316, %v314
        %v361 = vpack.c.b16 %v319, %v317
        %v362 = vpack.c.b16 %v320, %v318
        %v363 = vpack.c.b16 %v323, %v321
        %v364 = vpack.c.b16 %v324, %v322
        %v365 = vpack.c.b16 %v327, %v325
        %v366 = vpack.c.b16 %v328, %v326
        %v367 = vpack.c.b16 %v331, %v329
        %v368 = vpack.c.b16 %v332, %v330
        %v369 = vpack.c.b16 %v335, %v333
        %v370 = vpack.c.b16 %v336, %v334
        %v371 = vpack.c.b16 %v339, %v337
        %v372 = vpack.c.b16 %v340, %v338
        %405 = vmatprep.subr.bf16.mxu0 %v356
        %406 = vmatpush1.bf16.msra.mxu0 %v355
        %407 = vmatprep.subr.bf16.mxu0 %v354
        %408 = vmatpush1.bf16.msra.mxu0 %v353
        %409 = vmatprep.subr.bf16.mxu0 %v352
        %410 = vmatpush1.bf16.msra.mxu0 %v351
        %411 = vmatprep.subr.bf16.mxu0 %v350
        %412 = vmatpush1.bf16.msra.mxu0 %v349
        %413 = vmatprep.subr.bf16.mxu0 %v348
        %414 = vmatpush1.bf16.msra.mxu0 %v347
        %415 = vmatprep.subr.bf16.mxu0 %v346
        %416 = vmatpush1.bf16.msra.mxu0 %v345
        %417 = vmatprep.subr.bf16.mxu0 %v344
        %418 = vmatpush1.bf16.msra.mxu0 %v343
        %419 = vmatprep.subr.bf16.mxu0 %v342
        %420 = vmatpush1.bf16.msra.mxu0 %v341
        %421 = vmatprep.subr.bf16.mxu0 %v372
        %422 = vmatpush2.bf16.msra.mxu0 %v371
        %423 = vmatprep.subr.bf16.mxu0 %v370
        %424 = vmatpush2.bf16.msra.mxu0 %v369
        %425 = vmatprep.subr.bf16.mxu0 %v368
        %426 = vmatpush2.bf16.msra.mxu0 %v367
        %427 = vmatprep.subr.bf16.mxu0 %v366
        %428 = vmatpush2.bf16.msra.mxu0 %v365
        %429 = vmatprep.subr.bf16.mxu0 %v364
        %430 = vmatpush2.bf16.msra.mxu0 %v363
        %431 = vmatprep.subr.bf16.mxu0 %v362
        %432 = vmatpush2.bf16.msra.mxu0 %v361
        %433 = vmatprep.subr.bf16.mxu0 %v360
        %434 = vmatpush2.bf16.msra.mxu0 %v359
        %435 = vmatprep.subr.bf16.mxu0 %v358
        %436 = vmatpush2.bf16.msra.mxu0 %v357
        %437 = vmatprep.mubr.bf16.mxu0 %v242
        %438 = vmatmul.mubr.bf16.gmra.mxu0 %v235
        %v439 = vpop.f32.mrf.mxu0
        %v440 = vadd.f32 0.0, %v439
        %v441 = vpop.f32.mrf.mxu0
        %v442 = vadd.f32 0.0, %v441
        %v443 = vpop.f32.mrf.mxu0
        %v444 = vpop.f32.mrf.mxu0
        %445 = vdwg.mxu0
        %v448 = vcombine.low %v440, %v442
        %v450 = vunpack.c.l.s4 1983009808
        %v451 = vunpack.c.0.s8 %v450
        %v452 = vlaneseq
        %v453 = vshrl.u32 %v452, 7
        %v454 = vsub.s32 %v451, %v453
        %v455 = vrot.slane %v448, %v454
        %v457 = vadd.f32 %v186, %v455
        %458 = vst [vmem:[#allocation2] sm:$0xf] %v457
        %p459 = scmp.eq.s32.totalorder %s15, 3
        // Predicated region
        $region37: #{normalize_forward.1} parent=31 // pred_check
          %p460 = pneg %p459
        $region38: #{normalize_forward.1} parent=31 // pred_check_branch
          %462 = sbr.rel (%p460) target = $region40
        $region39: #{normalize_forward.1} parent=31 // pred_region
          %v463 = vld [vmem:[#allocation2] sm:$0xf]
          %v464 = vld [vmem:[%s2] sm:$0x3]
          %v466 = vlaneseq
          %v467 = vshrl.u32 %v466, 7
          %v468 = vsub.s32 0, %v467
          %v469 = vrot.slane %v464, %v468
          %v470 = vlaneseq
          %v471 = vshrl.u32 %v470, 7
          %v472 = vsub.s32 1, %v471
          %v473 = vrot.slane %v464, %v472
          %v474 = vcombine.low %v469, %v473
          %v476 = vunpack.c.l.s4 1983009808
          %v477 = vunpack.c.0.s8 %v476
          %v478 = vlaneseq
          %v479 = vshrl.u32 %v478, 7
          %v480 = vsub.s32 %v477, %v479
          %v481 = vrot.slane %v474, %v480
          %v483 = vadd.f32 %v463, %v481
          %v484 = vmul.f32 %v483, %v483
          %v487 = vunpack.c.l.s4 1983009808
          %v488 = vunpack.c.0.s8 %v487
          %v489 = vlaneseq
          %v490 = vshrl.u32 %v489, 7
          %v491 = vsub.s32 %v488, %v490
          %v492 = vrot.slane %v484, %v491
          %v493 = vcombine.high %v492, %v492
          %vm496 = vcmask 1041408
          %v497 = vsel %vm496, %v492, 0.0
          %v498 = vsel %vm496, %v493, 0.0
          %v499 = vadd.f32 %v497, %v498
          %500 = vadd.xlane.f32.xlu0 %v499
          %v501 = vpop.xlane.xlu0 %500
          %v502 = vrsqrt.pop %v501
          %v503 = vmin.f32 %v502, 1e+12
          %v506 = vunpack.c.l.s4 269488144
          %v507 = vunpack.c.0.s8 %v506
          %v508 = vlaneseq
          %v509 = vshrl.u32 %v508, 7
          %v510 = vsub.s32 %v507, %v509
          %v511 = vrot.slane %v503, %v510
          %v513 = vmul.f32 %v483, %v511
          %514 = vst [vmem:[#allocation3] sm:$0xf] %v513
        $region40: #{normalize_forward.1} parent=31 // pred_fallthru
          _
        // Predicated region
        $region41: #{normalize_forward.1} parent=31 // pred_check
          %p515 = pneg %p101
        $region42: #{normalize_forward.1} parent=31 // pred_check_branch
          %517 = sbr.rel (%p515) target = $region44
        $region43: #{normalize_forward.1} parent=31 // pred_region
          %s519 = ssub.s32 64, 64
          %520 = vsyncadd [#allocation4], %s519
          %s522 = sshll.u32 [#allocation3], 4
          %s523 = int_to_ptr.vmem [resolvable:$true] %s522
          %525 = dma.vmem_to_hbm [thread:$0]  %s523, 64, %s3, [#allocation4]
        $region44: #{normalize_forward.1} parent=31 // pred_fallthru
          _
        // Predicated region
        $region45: #{normalize_forward.1} parent=31 // pred_check
          %p526 = pneg %p101
        $region46: #{normalize_forward.1} parent=31 // pred_check_branch
          %528 = sbr.rel (%p526) target = $region48
        $region47: #{normalize_forward.1} parent=31 // pred_region
          %529 = dma.done [#allocation4], 64
        $region48: #{normalize_forward.1} parent=31 // pred_fallthru
          _
      $region32: #{normalize_forward.1} parent=5 // pred_fallthru
        _
      %p530 = scmp.le.s32.totalorder 2, %s10
      // Predicated region
      $region49: #{normalize_forward.1} parent=5 // pred_check
        %p531 = pneg %p530
      $region50: #{normalize_forward.1} parent=5 // pred_check_branch
        %533 = sbr.rel (%p531) target = $region52
      $region51: #{normalize_forward.1} parent=5 // pred_region
        %s534 = ssub.s32 %s10, 2
      $region52: #{normalize_forward.1} parent=5 // pred_fallthru
        _
    $region6: #{normalize_forward.1} parent=1 // loop_footer
      %s14 = sadd.s32 1, %s10
    $region7: #{normalize_forward.1} parent=1 // loop_footer_branch
      %9 = sbr.rel target = $region3
    $region8: #{normalize_forward.1} parent=1 // loop_exit
      _
    %535 = vsyncpa [#allocation4], 1
    %s536 = scalar_lea.sflag [#allocation4], 1
    %537 = vsyncpa %s536, 1

</llo_original>
